<compile_context>
chip_gen: v7x
topology: tpu7x:2x2x1
jax: 0.10.0
libtpu: 0.0.40
codegen_flags: <defaults>
</compile_context>

<pallas_src>
import functools

import jax
import jax.numpy as jnp
from jax.experimental import pallas as pl
from jax.experimental.pallas import tpu as pltpu

LANES = 128          # TPU lane width; also the hidden size fixed by the module
HIDDEN = 128
NEG_BIG = -1e30      # finite mask for padded action lanes (never -inf)


def _round_up(n, m):
    return (n + m - 1) // m * m


def _policy_kernel(x_ref, p1_ref, w2_ref, out_ref, *, w1_rows):
    # ---- fc1 + ReLU on the MXU (augmented ones column multiplies the b1 row) --
    x_aug = x_ref[...]                                    # (bB, w1_rows) f32
    wb1 = p1_ref[pl.ds(0, w1_rows), :]                    # (w1_rows, 128): W1 rows + b1 row
    h = jnp.maximum(
        jnp.dot(x_aug, wb1, preferred_element_type=jnp.float32), 0.0)   # (bB, 128)

    # ---- fc2 on the MXU in bf16 (single pass), f32 accumulate ------------------
    b2 = p1_ref[pl.ds(w1_rows, 1), :]                     # (1, 128); padded lanes = -1e30
    logits = jnp.dot(h.astype(jnp.bfloat16), w2_ref[...],
                     preferred_element_type=jnp.float32) + b2           # (bB, 128)

    # ---- numerically stable softmax; masked lanes underflow to exactly 0 -------
    m = jnp.max(logits, axis=-1, keepdims=True)
    e = jnp.exp(logits - m)
    denom = jnp.sum(e, axis=-1, keepdims=True)
    out_ref[...] = e * pl.reciprocal(denom, approx=True)  # lane-dense (bB, 128) store


def pack_params(w1, b1, w2, b2):
    """Pack parameters for the kernel (done once, outside the hot path).

    Returns:
      p1  : f32 (w1_rows + 8, 128)
              rows [0, S)   W1
              row  S        b1              (hit by the 1.0 column of x_aug)
              row  w1_rows  b2              (padded action lanes = -1e30 mask)
      w2p : bf16 (128, 128)  W2 with padded action columns zeroed.
    """
    S, H = w1.shape
    A = w2.shape[-1]
    assert H == HIDDEN == LANES, "module fixes hidden=128"
    w1_rows = _round_up(S + 1, 8)                         # sublane-aligned fc1 block

    p1 = jnp.zeros((w1_rows + 8, LANES), jnp.float32)
    p1 = p1.at[:S, :].set(w1.astype(jnp.float32))
    p1 = p1.at[S, :].set(b1.reshape(H).astype(jnp.float32))
    b2_row = jnp.full((LANES,), NEG_BIG, jnp.float32).at[:A].set(
        b2.reshape(A).astype(jnp.float32))
    p1 = p1.at[w1_rows, :].set(b2_row)

    w2p = jnp.zeros((H, LANES), jnp.bfloat16).at[:, :A].set(w2.astype(jnp.bfloat16))
    return p1, w2p


def policy_network_forward(x, p1, w2p, *, state_dim, actions, block_b=2048, trim=True):
    """x: (B, state_space) f32 -> action probabilities.

    trim=True  : returns (B, actions), exact module semantics.
    trim=False : returns the lane-padded (B, 128) slab (padded lanes are exactly
                 0), letting downstream consumers skip the extra HBM slice pass.
    """
    B = x.shape[0]
    S = state_dim
    w1_rows = _round_up(S + 1, 8)

    # Batch tile: multiple of 8 sublanes, capped at block_b.  When the whole
    # batch would be a single tile, split it so the ("parallel",) grid has at
    # least 2 steps and both TensorCores participate on v7x.
    bB = min(block_b, _round_up(B, 8))
    if B >= 16 and _round_up(B, bB) // bB < 2:
        bB = _round_up(pl.cdiv(B, 2), 8)
    Bp = _round_up(B, bB)

    # Augmented input: features in cols [0, S), a 1.0 column at S (selects the
    # b1 row of the packed fc1 block), zeros elsewhere and for padded rows.
    x_aug = jnp.zeros((Bp, w1_rows), jnp.float32)
    x_aug = x_aug.at[:B, :S].set(x.astype(jnp.float32))
    x_aug = x_aug.at[:B, S].set(1.0)

    kernel = functools.partial(_policy_kernel, w1_rows=w1_rows)

    slab = pl.pallas_call(
        kernel,
        out_shape=jax.ShapeDtypeStruct((Bp, LANES), jnp.float32),
        grid=(Bp // bB,),
        in_specs=[
            pl.BlockSpec((bB, w1_rows), lambda i: (i, 0)),            # streamed batch tile
            pl.BlockSpec((w1_rows + 8, LANES), lambda i: (0, 0)),     # f32 params, loaded once
            pl.BlockSpec((HIDDEN, LANES), lambda i: (0, 0)),          # bf16 W2, loaded once
        ],
        out_specs=pl.BlockSpec((bB, LANES), lambda i: (i, 0)),        # lane-dense slab
        compiler_params=pltpu.CompilerParams(
            dimension_semantics=("parallel",)),                        # megacore on v7x
    )(x_aug, p1, w2p)

    if trim:
        return slab[:B, :actions]
    return slab if Bp == B else slab[:B]


def init_params(key, state_space, hidden, action_space):
    """Deterministic init mirroring nn.Linear's default U(-1/sqrt(fan_in), ...)."""
    k1, k2, k3, k4 = jax.random.split(key, 4)
    lim1 = 1.0 / jnp.sqrt(jnp.float32(state_space))
    lim2 = 1.0 / jnp.sqrt(jnp.float32(hidden))
    w1 = jax.random.uniform(k1, (state_space, hidden), jnp.float32, -lim1, lim1)
    b1 = jax.random.uniform(k2, (1, hidden), jnp.float32, -lim1, lim1)
    w2 = jax.random.uniform(k3, (hidden, action_space), jnp.float32, -lim2, lim2)
    b2 = jax.random.uniform(k4, (1, action_space), jnp.float32, -lim2, lim2)
    return w1, b1, w2, b2


def _reference(x, w1, b1, w2, b2):
    return jax.nn.softmax(jnp.maximum(x @ w1 + b1, 0.0) @ w2 + b2, axis=-1)


if __name__ == "__main__":
    key = jax.random.PRNGKey(0)
    k_x, k_p, k_x2, k_x3 = jax.random.split(key, 4)

    B, STATE, HID, ACTIONS = 2, 4, 128, 6   # hidden=128 fixed by the module
    x = jax.random.normal(k_x, (B, STATE), dtype=jnp.float32)
    w1, b1, w2, b2 = init_params(k_p, STATE, HID, ACTIONS)
    p1, w2p = pack_params(w1, b1, w2, b2)

    # bf16 fc2 + approx reciprocal -> compare with a correspondingly loose tol.
    TOL = dict(atol=1e-2, rtol=1e-2)

    probs = jax.block_until_ready(
        policy_network_forward(x, p1, w2p, state_dim=STATE, actions=ACTIONS))
    ref = _reference(x, w1, b1, w2, b2)
    assert probs.shape == (B, ACTIONS)
    assert jnp.allclose(probs, ref, **TOL), "mismatch vs reference"
    assert jnp.allclose(jnp.sum(probs, axis=-1), 1.0, atol=5e-3)

    # Multi-step batch grid + row padding (block_b=8 -> 3 grid steps).
    B2 = 20
    x2 = jax.random.normal(k_x2, (B2, STATE), dtype=jnp.float32)
    probs2 = jax.block_until_ready(
        policy_network_forward(x2, p1, w2p, state_dim=STATE, actions=ACTIONS, block_b=8))
    assert probs2.shape == (B2, ACTIONS)
    assert jnp.allclose(probs2, _reference(x2, w1, b1, w2, b2), **TOL), "batched mismatch"

    # Larger batch: exercises the megacore split (>= 2 grid steps) and the
    # trim=False path (lane-padded slab; padded action lanes are exactly 0).
    B3 = 600
    x3 = jax.random.normal(k_x3, (B3, STATE), dtype=jnp.float32)
    slab3 = jax.block_until_ready(
        policy_network_forward(x3, p1, w2p, state_dim=STATE, actions=ACTIONS, trim=False))
    assert slab3.shape == (B3, LANES)
    assert bool(jnp.all(slab3[:, ACTIONS:] == 0.0)), "padded action lanes must be exactly 0"
    assert jnp.allclose(slab3[:, :ACTIONS], _reference(x3, w1, b1, w2, b2), **TOL), \
        "large-batch mismatch vs reference"

    # TODO(synk): select_action's torch.multinomial sampling stays host/JAX side
    # (jax.random.categorical on the returned probabilities); not part of forward().
    print("KERNEL_OK")
</pallas_src>

<mosaic_0001>
module attributes {stable_mosaic.version = 11 : i64} {
  func.func @_policy_kernel(%arg0: i32, %arg1: memref<8x8xf32, #tpu.memory_space<vmem>>, %arg2: memref<16x128xf32, #tpu.memory_space<vmem>>, %arg3: memref<128x128xbf16, #tpu.memory_space<vmem>>, %arg4: memref<8x128xf32, #tpu.memory_space<vmem>>) attributes {dimension_semantics = [#tpu.dimension_semantics<parallel>], iteration_bounds = array<i64: 1>, scalar_prefetch = 0 : i64, scratch_operands = 0 : i64, tpu.core_type = #tpu.core_type<tc>, window_params = [{transform_indices = @transform_0, window_bounds = array<i64: 8, 8>}, {pipeline_mode = #tpu.pipeline_mode<synchronous>, transform_indices = @transform_1, window_bounds = array<i64: 16, 128>}, {pipeline_mode = #tpu.pipeline_mode<synchronous>, transform_indices = @transform_2, window_bounds = array<i64: 128, 128>}, {transform_indices = @transform_3, window_bounds = array<i64: 8, 128>}]} {
    %c0 = arith.constant 0 : index
    %c0_0 = arith.constant 0 : index
    %0 = vector.load %arg1[%c0, %c0_0] : memref<8x8xf32, #tpu.memory_space<vmem>>, vector<8x8xf32>
    %c0_1 = arith.constant 0 : index
    %c0_2 = arith.constant 0 : index
    %1 = vector.load %arg2[%c0_1, %c0_2] : memref<16x128xf32, #tpu.memory_space<vmem>>, vector<8x128xf32>
    %cst = arith.constant dense<0.000000e+00> : vector<8x128xf32>
    %2 = tpu.matmul %0, %1, %cst {dimension_numbers = #tpu.dot_dimension_numbers<[1], [0], [0], [1], [0, 0, 1, 1], [], []>} : vector<8x8xf32>, vector<8x128xf32>, vector<8x128xf32> -> vector<8x128xf32>
    %cst_3 = arith.constant 0.000000e+00 : f32
    %3 = vector.broadcast %cst_3 : f32 to vector<8x128xf32>
    %4 = arith.maximumf %2, %3 : vector<8x128xf32>
    %c8 = arith.constant 8 : index
    %c0_4 = arith.constant 0 : index
    %5 = vector.load %arg2[%c8, %c0_4] : memref<16x128xf32, #tpu.memory_space<vmem>>, vector<1x128xf32>
    %6 = arith.truncf %4 : vector<8x128xf32> to vector<8x128xbf16>
    %c0_5 = arith.constant 0 : index
    %c0_6 = arith.constant 0 : index
    %7 = vector.load %arg3[%c0_5, %c0_6] : memref<128x128xbf16, #tpu.memory_space<vmem>>, vector<128x128xbf16>
    %cst_7 = arith.constant dense<0.000000e+00> : vector<8x128xf32>
    %8 = tpu.matmul %6, %7, %cst_7 {dimension_numbers = #tpu.dot_dimension_numbers<[1], [0], [0], [1], [0, 0, 1, 1], [], []>} : vector<8x128xbf16>, vector<128x128xbf16>, vector<8x128xf32> -> vector<8x128xf32>
    %9 = vector.broadcast %5 : vector<1x128xf32> to vector<8x128xf32>
    %10 = arith.addf %8, %9 : vector<8x128xf32>
    %cst_8 = arith.constant dense<0xFF800000> : vector<8xf32>
    %11 = vector.multi_reduction <maximumf>, %10, %cst_8 [1] : vector<8x128xf32> to vector<8xf32>
    %12 = vector.shape_cast %11 : vector<8xf32> to vector<8x1xf32>
    %13 = vector.broadcast %12 : vector<8x1xf32> to vector<8x128xf32>
    %14 = arith.subf %10, %13 : vector<8x128xf32>
    %15 = math.exp %14 : vector<8x128xf32>
    %cst_9 = arith.constant dense<0.000000e+00> : vector<8xf32>
    %16 = vector.multi_reduction <add>, %15, %cst_9 [1] : vector<8x128xf32> to vector<8xf32>
    %17 = vector.shape_cast %16 : vector<8xf32> to vector<8x1xf32>
    %18 = tpu.reciprocal %17 {approx = true} : vector<8x1xf32> -> vector<8x1xf32>
    %19 = vector.broadcast %18 : vector<8x1xf32> to vector<8x128xf32>
    %20 = arith.mulf %15, %19 : vector<8x128xf32>
    %c0_10 = arith.constant 0 : index
    %c0_11 = arith.constant 0 : index
    %21 = vector.load %arg4[%c0_10, %c0_11] : memref<8x128xf32, #tpu.memory_space<vmem>>, vector<8x128xf32>
    tpu.vector_store %arg4[%c0_10, %c0_11], %20 {strides = array<i32>} : memref<8x128xf32, #tpu.memory_space<vmem>>, vector<8x128xf32>,
    return
  }
  func.func @transform_0(%arg0: i32) -> (i32, i32) {
    %c0_i32 = arith.constant 0 : i32
    %c0_i32_0 = arith.constant 0 : i32
    return %arg0, %c0_i32 : i32, i32
  }
  func.func @transform_1(%arg0: i32) -> (i32, i32) {
    %c0_i32 = arith.constant 0 : i32
    %c0_i32_0 = arith.constant 0 : i32
    %c0_i32_1 = arith.constant 0 : i32
    return %c0_i32, %c0_i32_0 : i32, i32
  }
  func.func @transform_2(%arg0: i32) -> (i32, i32) {
    %c0_i32 = arith.constant 0 : i32
    %c0_i32_0 = arith.constant 0 : i32
    %c0_i32_1 = arith.constant 0 : i32
    return %c0_i32, %c0_i32_0 : i32, i32
  }
  func.func @transform_3(%arg0: i32) -> (i32, i32) {
    %c0_i32 = arith.constant 0 : i32
    %c0_i32_0 = arith.constant 0 : i32
    return %arg0, %c0_i32 : i32, i32
  }
}

</mosaic_0001>

<llo_original>
// kernel: tpu_custom_call.1
$region0: #{tpu_custom_call.1}
  #allocation0 [shape = 'u32[]', space=smem, size = 0x4, offset = 0x4, fixed_abs, tag = 'smem constant byte address 0x4 - core index']
  #allocation1 [shape = 'u32[144,128]{1,0:T(1,128)}', space=vmem, size = 0x12000, scoped, tag = 'internal scratch']
  %s0 = inlined_call_operand.hbm [shape: f32[8,8], index: 0, kind: input, shape index: {}]
  %s1 = inlined_call_operand.hbm [shape: f32[16,128], index: 1, kind: input, shape index: {}]
  %s2 = inlined_call_operand.hbm [shape: bf16[128,128], index: 2, kind: input, shape index: {}]
  %s3 = inlined_call_operand.hbm [shape: f32[8,128], index: 3, kind: output, shape index: {}]
  %s4 = sld [smem:[#allocation0]]
  $region34: #{tpu_custom_call.1} parent=0
    _
  %s6 = ssub.s32 1, %s4
  %s7 = scalar_select 0, %s6, %s4
  $region1: #{tpu_custom_call.1} parent=0
    #allocation2 [shape = 'u8[4096]{0}', space=vmem, size = 0x1000, scoped, tag = 'input window, operand 0, single buffered']
    #allocation3 [shape = 's32[1]{0}', space=sflag, size = 0x4, scoped, tag = 'scoped memory for tpu_custom_call.1']
    #allocation4 [shape = 's32[1]{0}', space=sflag, size = 0x4, scoped, tag = 'scoped memory for tpu_custom_call.1']
    #allocation5 [shape = 'u8[8192]{0}', space=vmem, size = 0x2000, scoped, tag = 'input window, operand 1, single buffered']
    #allocation6 [shape = 's32[1]{0}', space=sflag, size = 0x4, scoped, tag = 'scoped memory for tpu_custom_call.1']
    #allocation7 [shape = 'u8[32768]{0}', space=vmem, size = 0x8000, scoped, tag = 'input window, operand 2, single buffered']
    #allocation8 [shape = 'u8[4096]{0}', space=vmem, size = 0x1000, scoped, tag = 'output window, operand 0, single buffered']
    %8 = vsyncpa [#allocation3], 0
    %9 = vsyncpa [#allocation6], 0
    %10 = vsyncpa [#allocation4], 0
    // Predicated region
    $region2: #{tpu_custom_call.1} parent=1 // pred_check
      _
    $region3: #{tpu_custom_call.1} parent=1 // pred_check_branch
      %12 = sbr.rel (0) target = $region5
    $region4: #{tpu_custom_call.1} parent=1 // pred_region
      %s14 = ssub.s32 128, 128
      %15 = vsyncadd [#allocation3], %s14
      %s17 = sshll.u32 [#allocation2], 4
      %s18 = int_to_ptr.vmem [resolvable:$true] %s17
      %20 = dma.hbm_to_vmem [thread:$0]  %s0, 128, %s18, [#allocation3]
    $region5: #{tpu_custom_call.1} parent=1 // pred_fallthru
      _
    // Predicated region
    $region6: #{tpu_custom_call.1} parent=1 // pred_check
      _
    $region7: #{tpu_custom_call.1} parent=1 // pred_check_branch
      %22 = sbr.rel (0) target = $region9
    $region8: #{tpu_custom_call.1} parent=1 // pred_region
      %s24 = ssub.s32 256, 256
      %25 = vsyncadd [#allocation6], %s24
      %s26 = sshll.u32 [#allocation5], 4
      %s27 = int_to_ptr.vmem [resolvable:$true] %s26
      %32 = dma.hbm_to_vmem [thread:$0]  %s1, 256, %s27, [#allocation6], 128, 128, 8
    $region9: #{tpu_custom_call.1} parent=1 // pred_fallthru
      _
    // Predicated region
    $region10: #{tpu_custom_call.1} parent=1 // pred_check
      _
    $region11: #{tpu_custom_call.1} parent=1 // pred_check_branch
      %34 = sbr.rel (0) target = $region13
    $region12: #{tpu_custom_call.1} parent=1 // pred_region
      %s36 = ssub.s32 1024, 1024
      %37 = vsyncadd [#allocation6], %s36
      %s38 = sshll.u32 [#allocation7], 4
      %s39 = int_to_ptr.vmem [resolvable:$true] %s38
      %44 = dma.hbm_to_vmem [thread:$0]  %s2, 1024, %s39, [#allocation6], 64, 64, 4
    $region13: #{tpu_custom_call.1} parent=1 // pred_fallthru
      _
    // Predicated region
    $region14: #{tpu_custom_call.1} parent=1 // pred_check
      _
    $region15: #{tpu_custom_call.1} parent=1 // pred_check_branch
      %46 = sbr.rel (0) target = $region17
    $region16: #{tpu_custom_call.1} parent=1 // pred_region
      %47 = dma.done [#allocation3], 128
    $region17: #{tpu_custom_call.1} parent=1 // pred_fallthru
      _
    // Predicated region
    $region18: #{tpu_custom_call.1} parent=1 // pred_check
      _
    $region19: #{tpu_custom_call.1} parent=1 // pred_check_branch
      %49 = sbr.rel (0) target = $region21
    $region20: #{tpu_custom_call.1} parent=1 // pred_region
      %50 = dma.done [#allocation6], 256
    $region21: #{tpu_custom_call.1} parent=1 // pred_fallthru
      _
    // Predicated region
    $region22: #{tpu_custom_call.1} parent=1 // pred_check
      _
    $region23: #{tpu_custom_call.1} parent=1 // pred_check_branch
      %52 = sbr.rel (0) target = $region25
    $region24: #{tpu_custom_call.1} parent=1 // pred_region
      %53 = dma.done [#allocation6], 1024
    $region25: #{tpu_custom_call.1} parent=1 // pred_fallthru
      _
    %v55 = vld [vmem:[#allocation2] sm:$0xff]
    %v56 = vld [vmem:[#allocation5] sm:$0xff]
    %vm57 = vcmask 64512
    %v59 = vsel %vm57, %v55, 0
    %61 = vmatprep.subr.mxu0 0.0
    %62 = vmatpush1.msra.mxu0 %v56
    %63 = vmatprep.subr.mxu0 0.0
    %64 = vmatpush1.msra.mxu0 0.0
    %65 = vmatprep.subr.mxu0 0.0
    %66 = vmatpush1.msra.mxu0 0.0
    %67 = vmatprep.subr.mxu0 0.0
    %68 = vmatpush1.msra.mxu0 0.0
    %69 = vmatprep.subr.mxu0 0.0
    %70 = vmatpush1.msra.mxu0 0.0
    %71 = vmatprep.subr.mxu0 0.0
    %72 = vmatpush1.msra.mxu0 0.0
    %73 = vmatprep.subr.mxu0 0.0
    %74 = vmatpush1.msra.mxu0 0.0
    %75 = vmatprep.subr.mxu0 0.0
    %76 = vmatpush1.msra.mxu0 0.0
    %77 = vmatprep.subr.mxu0 0.0
    %78 = vmatpush1.msra.mxu0 0.0
    %79 = vmatprep.subr.mxu0 0.0
    %80 = vmatpush1.msra.mxu0 0.0
    %81 = vmatprep.subr.mxu0 0.0
    %82 = vmatpush1.msra.mxu0 0.0
    %83 = vmatprep.subr.mxu0 0.0
    %84 = vmatpush1.msra.mxu0 0.0
    %85 = vmatprep.subr.mxu0 0.0
    %86 = vmatpush1.msra.mxu0 0.0
    %87 = vmatprep.subr.mxu0 0.0
    %88 = vmatpush1.msra.mxu0 0.0
    %89 = vmatprep.subr.mxu0 0.0
    %90 = vmatpush1.msra.mxu0 0.0
    %91 = vmatprep.subr.mxu0 0.0
    %92 = vmatpush1.msra.mxu0 0.0
    %93 = vmatprep.subr.mxu0 0.0
    %94 = vmatpush1.msra.mxu0 0.0
    %95 = vmatprep.subr.mxu0 0.0
    %96 = vmatpush1.msra.mxu0 0.0
    %97 = vmatprep.subr.mxu0 0.0
    %98 = vmatpush1.msra.mxu0 0.0
    %99 = vmatprep.subr.mxu0 0.0
    %100 = vmatpush1.msra.mxu0 0.0
    %101 = vmatprep.subr.mxu0 0.0
    %102 = vmatpush1.msra.mxu0 0.0
    %103 = vmatprep.subr.mxu0 0.0
    %104 = vmatpush1.msra.mxu0 0.0
    %105 = vmatprep.subr.mxu0 0.0
    %106 = vmatpush1.msra.mxu0 0.0
    %107 = vmatprep.subr.mxu0 0.0
    %108 = vmatpush1.msra.mxu0 0.0
    %109 = vmatprep.subr.mxu0 0.0
    %110 = vmatpush1.msra.mxu0 0.0
    %111 = vmatprep.subr.mxu0 0.0
    %112 = vmatpush1.msra.mxu0 0.0
    %113 = vmatprep.subr.mxu0 0.0
    %114 = vmatpush1.msra.mxu0 0.0
    %115 = vmatprep.subr.mxu0 0.0
    %116 = vmatpush1.msra.mxu0 0.0
    %117 = vmatprep.subr.mxu0 0.0
    %118 = vmatpush1.msra.mxu0 0.0
    %119 = vmatprep.subr.mxu0 0.0
    %120 = vmatpush1.msra.mxu0 0.0
    %121 = vmatprep.subr.mxu0 0.0
    %122 = vmatpush1.msra.mxu0 0.0
    %123 = vmatprep.subr.mxu0 0.0
    %124 = vmatpush1.msra.mxu0 0.0
    %125 = vmatprep.mubr.f32.mxu0 0.0
    %126 = vmatmul.mubr.f32.gmra.mrb[0].mxu0 %v59
    %v127 = vpop.f32.mrb[0].mxu0
    %v128 = vadd.f32 0.0, %v127
    %v129 = vpop.f32.mrb[0].mxu0
    %130 = vdwg.mxu0
    %v131 = vmax.f32 %v128, 0.0
    %v132 = vld [vmem:[#allocation5 + $0x8] sm:$0x1]
    %v133 = vpack.c.bf16 %v131, %v131
    %v134 = vld [vmem:[#allocation7] sm:$0xf]
    %v135 = vld [vmem:[#allocation7 + $0x4] sm:$0xf]
    %v136 = vld [vmem:[#allocation7 + $0x8] sm:$0xf]
    %v137 = vld [vmem:[#allocation7 + $0xc] sm:$0xf]
    %v138 = vld [vmem:[#allocation7 + $0x10] sm:$0xf]
    %v139 = vld [vmem:[#allocation7 + $0x14] sm:$0xf]
    %v140 = vld [vmem:[#allocation7 + $0x18] sm:$0xf]
    %v141 = vld [vmem:[#allocation7 + $0x1c] sm:$0xf]
    %v142 = vld [vmem:[#allocation7 + $0x20] sm:$0xf]
    %v143 = vld [vmem:[#allocation7 + $0x24] sm:$0xf]
    %v144 = vld [vmem:[#allocation7 + $0x28] sm:$0xf]
    %v145 = vld [vmem:[#allocation7 + $0x2c] sm:$0xf]
    %v146 = vld [vmem:[#allocation7 + $0x30] sm:$0xf]
    %v147 = vld [vmem:[#allocation7 + $0x34] sm:$0xf]
    %v148 = vld [vmem:[#allocation7 + $0x38] sm:$0xf]
    %v149 = vld [vmem:[#allocation7 + $0x3c] sm:$0xf]
    %v150 = vlaneseq
    %v151 = vshrl.u32 %v150, 7
    %v152 = vsub.s32 0, %v151
    %v153 = vrot.slane %v132, %v152
    %v170 = vunpack.c.l.b16 %v134
    %v171 = vunpack.c.l.b16 %v135
    %v172 = vunpack.c.l.b16 %v136
    %v173 = vunpack.c.l.b16 %v137
    %v174 = vunpack.c.l.b16 %v138
    %v175 = vunpack.c.l.b16 %v139
    %v176 = vunpack.c.l.b16 %v140
    %v177 = vunpack.c.l.b16 %v141
    %v178 = vunpack.c.l.b16 %v142
    %v179 = vunpack.c.l.b16 %v143
    %v180 = vunpack.c.l.b16 %v144
    %v181 = vunpack.c.l.b16 %v145
    %v182 = vunpack.c.l.b16 %v146
    %v183 = vunpack.c.l.b16 %v147
    %v184 = vunpack.c.l.b16 %v148
    %v185 = vunpack.c.l.b16 %v149
    %v186 = vpack.c.b16 %v171, %v170
    %v187 = vpack.c.b16 %v173, %v172
    %v188 = vpack.c.b16 %v175, %v174
    %v189 = vpack.c.b16 %v177, %v176
    %v190 = vpack.c.b16 %v179, %v178
    %v191 = vpack.c.b16 %v181, %v180
    %v192 = vpack.c.b16 %v183, %v182
    %v193 = vpack.c.b16 %v185, %v184
    %202 = vmatprep.subr.bf16.mxu0 0
    %203 = vmatpush1.bf16.msra.mxu0 %v186
    %204 = vmatprep.subr.bf16.mxu0 0
    %205 = vmatpush1.bf16.msra.mxu0 %v187
    %206 = vmatprep.subr.bf16.mxu0 0
    %207 = vmatpush1.bf16.msra.mxu0 %v188
    %208 = vmatprep.subr.bf16.mxu0 0
    %209 = vmatpush1.bf16.msra.mxu0 %v189
    %210 = vmatprep.subr.bf16.mxu0 0
    %211 = vmatpush1.bf16.msra.mxu0 %v190
    %212 = vmatprep.subr.bf16.mxu0 0
    %213 = vmatpush1.bf16.msra.mxu0 %v191
    %214 = vmatprep.subr.bf16.mxu0 0
    %215 = vmatpush1.bf16.msra.mxu0 %v192
    %216 = vmatprep.subr.bf16.mxu0 0
    %217 = vmatpush1.bf16.msra.mxu0 %v193
    %218 = vmatprep.subr.bf16.mxu0 0
    %219 = vmatpush1.bf16.msra.mxu0 0
    %220 = vmatprep.subr.bf16.mxu0 0
    %221 = vmatpush1.bf16.msra.mxu0 0
    %222 = vmatprep.subr.bf16.mxu0 0
    %223 = vmatpush1.bf16.msra.mxu0 0
    %224 = vmatprep.subr.bf16.mxu0 0
    %225 = vmatpush1.bf16.msra.mxu0 0
    %226 = vmatprep.subr.bf16.mxu0 0
    %227 = vmatpush1.bf16.msra.mxu0 0
    %228 = vmatprep.subr.bf16.mxu0 0
    %229 = vmatpush1.bf16.msra.mxu0 0
    %230 = vmatprep.subr.bf16.mxu0 0
    %231 = vmatpush1.bf16.msra.mxu0 0
    %232 = vmatprep.subr.bf16.mxu0 0
    %233 = vmatpush1.bf16.msra.mxu0 0
    %234 = vmatprep.mubr.bf16.mxu0 0
    %235 = vmatmul.mubr.bf16.gmra.mrb[0].mxu0 %v133
    %v236 = vpop.f32.mrb[0].mxu0
    %v237 = vadd.f32 %v153, %v236
    %v238 = vpop.f32.mrb[0].mxu0
    %v239 = vpop.f32.mrb[0].mxu0
    %v240 = vpop.f32.mrb[0].mxu0
    %241 = vdwg.mxu0
    %242 = vmax.xlane.f32.xlu0 %v237
    %v243 = vpop.xlane.xlu0 %242
    %v244 = vsub.f32 %v237, %v243
    %v245 = vmul.f32 %v244, 1.442695
    %v246 = vpow.pop %v245
    %247 = vadd.xlane.f32.xlu0 %v246
    %v248 = vpop.xlane.xlu0 %247
    %v249 = vrcp.pop %v248
    %v250 = vmul.f32 %v246, %v249
    %251 = vst [vmem:[#allocation8] sm:$0xff] %v250
    // Predicated region
    $region26: #{tpu_custom_call.1} parent=1 // pred_check
      _
    $region27: #{tpu_custom_call.1} parent=1 // pred_check_branch
      %253 = sbr.rel (0) target = $region29
    $region28: #{tpu_custom_call.1} parent=1 // pred_region
      %s255 = ssub.s32 128, 128
      %256 = vsyncadd [#allocation4], %s255
      %s258 = sshll.u32 [#allocation8], 4
      %s259 = int_to_ptr.vmem [resolvable:$true] %s258
      %261 = dma.vmem_to_hbm [thread:$0]  %s259, 128, %s3, [#allocation4]
    $region29: #{tpu_custom_call.1} parent=1 // pred_fallthru
      _
    // Predicated region
    $region30: #{tpu_custom_call.1} parent=1 // pred_check
      _
    $region31: #{tpu_custom_call.1} parent=1 // pred_check_branch
      %263 = sbr.rel (0) target = $region33
    $region32: #{tpu_custom_call.1} parent=1 // pred_region
      %264 = dma.done [#allocation4], 128
    $region33: #{tpu_custom_call.1} parent=1 // pred_fallthru
      _
    %265 = vsyncpa [#allocation3], 1
    %266 = vsyncpa [#allocation6], 1
    %267 = vsyncpa [#allocation4], 1

</llo_original>
